<compile_context>
chip_gen: v7x
topology: tpu7x:2x2x1
jax: 0.10.0
libtpu: 0.0.40
codegen_flags: <defaults>
</compile_context>

<pallas_src>
import jax
import jax.numpy as jnp
from jax.experimental import pallas as pl
from jax.experimental.pallas import tpu as pltpu

EPS = 1e-5
_MIB = 1024 * 1024
_TARGET_LANES = 2048  # lanes per block (16 vregs wide)


def _vmem_budget_bytes() -> int:
    """Scoped-VMEM limit with headroom, derived from physical VMEM."""
    try:
        cap = pltpu.get_tpu_info().vmem_capacity_bytes
    except Exception:
        cap = 64 * _MIB  # conservative default (v7x per-core VMEM)
    return max(16 * _MIB, min(cap // 2, 64 * _MIB))


def _pick_tile(total: int, align: int, target: int) -> int:
    """Tile size for one axis.

    Full extent if it fits; otherwise the largest `align`-multiple <= target,
    preferring (a) an exact divisor of `total` (no boundary block at all) and
    (b) tiles whose boundary remainder is >= `align` (no narrow masked sliver).
    """
    if total <= target:
        return total
    t_max = max((target // align) * align, align)
    exact, no_sliver = 0, 0
    c = t_max
    while c >= align and (exact == 0 or no_sliver == 0):
        if exact == 0 and total % c == 0:
            exact = c
        if no_sliver == 0 and total % c >= align:
            no_sliver = c
        c -= align
    if exact >= t_max // 2:
        return exact
    if no_sliver:
        return no_sliver
    return exact if exact else t_max


def _ensure_multicore_grid(tile_r, tile_c, rows, cols, align_r):
    """If everything fits one block, split so >= 2 programs exist.

    v7x has 2 TensorCores; a (1, 1) grid idles one of them.  On 1-core chips
    the extra grid step costs ~0.35 us (noise), so apply unconditionally.
    """
    if pl.cdiv(rows, tile_r) * pl.cdiv(cols, tile_c) >= 2:
        return tile_r, tile_c
    if rows >= 2 * align_r:
        half = ((rows // 2 + align_r - 1) // align_r) * align_r
        return half, tile_c
    if cols >= 2 * 128:
        half = ((cols // 2 + 127) // 128) * 128
        return tile_r, half
    return tile_r, tile_c  # too small to split legally


def _bn_kernel_row_params(p_ref, x_ref, o_ref):
    """Layout A: rows are (n, c) pairs.  p_ref: (tile_r, 2) = [scale | shift]."""
    p = p_ref[...]
    x = x_ref[...].astype(p.dtype)
    o_ref[...] = (x * p[:, 0:1] + p[:, 1:2]).astype(o_ref.dtype)


def _bn_kernel_lane_params(p_ref, x_ref, o_ref):
    """Layout B: lanes are (c, h, w) triples.  p_ref: (2, tile_c) = [scale ; shift]."""
    p = p_ref[...]
    x = x_ref[...].astype(p.dtype)
    o_ref[...] = (x * p[0:1, :] + p[1:2, :]).astype(o_ref.dtype)


def affine_batch_norm_2d(x, running_mean, running_var, weight, bias,
                         eps=EPS, donate_x=False):
    """AffineBatchNorm2d forward.  x: (N, C, H, W); per-channel params: (C,)."""
    N, C, H, W = x.shape
    hw = H * W

    # Fold the normalization into one scale/shift per channel (O(C), once).
    scale_c = weight.astype(jnp.float32) * jax.lax.rsqrt(
        running_var.astype(jnp.float32) + jnp.float32(eps))
    shift_c = bias.astype(jnp.float32) - running_mean.astype(jnp.float32) * scale_c

    # bf16 is native on v6e/v7x VALU: stay packed end-to-end for bf16 inputs.
    # TODO(synk): gate the bf16 fast path off on v5e (no bf16 VPU) via chip info.
    compute_dtype = jnp.bfloat16 if x.dtype == jnp.bfloat16 else jnp.float32
    align_r = 16 if compute_dtype == jnp.bfloat16 else 8

    itemsize = jnp.dtype(x.dtype).itemsize
    budget = _vmem_budget_bytes()
    # ~8 MiB blocks where VMEM is plentiful (v5e/v6e), ~4 MiB on v7x.
    block_bytes = 8 * _MIB if budget >= 64 * _MIB else 4 * _MIB

    if hw % 128 == 0:
        # ---- Layout A: (N*C, H*W); channel determined by row index. ----
        rows, cols = N * C, hw
        x2 = x.reshape(rows, cols)
        scale_r = jnp.broadcast_to(scale_c[None, :], (N, C)).reshape(rows)
        shift_r = jnp.broadcast_to(shift_c[None, :], (N, C)).reshape(rows)
        params = jnp.stack([scale_r, shift_r], axis=1).astype(compute_dtype)  # (rows, 2)
        kernel = _bn_kernel_row_params
        make_param_spec = lambda tr, tc: pl.BlockSpec((tr, 2), lambda i, j: (i, 0))
    else:
        # ---- Layout B: (N, C*H*W); channel determined by lane index. ----
        # Keeps the output lane dim wide even when H*W is small / not 128-aligned.
        rows, cols = N, C * hw
        x2 = x.reshape(rows, cols)
        scale_l = jnp.repeat(scale_c, hw)
        shift_l = jnp.repeat(shift_c, hw)
        params = jnp.stack([scale_l, shift_l], axis=0).astype(compute_dtype)  # (2, cols)
        kernel = _bn_kernel_lane_params
        make_param_spec = lambda tr, tc: pl.BlockSpec((2, tc), lambda i, j: (0, j))

    tile_c = _pick_tile(cols, 128, _TARGET_LANES)
    target_rows = max(align_r, block_bytes // max(tile_c * itemsize, 1))
    tile_r = _pick_tile(rows, align_r, target_rows)
    tile_r, tile_c = _ensure_multicore_grid(tile_r, tile_c, rows, cols, align_r)
    grid = (pl.cdiv(rows, tile_r), pl.cdiv(cols, tile_c))

    x_spec = pl.BlockSpec((tile_r, tile_c), lambda i, j: (i, j))
    p_spec = make_param_spec(tile_r, tile_c)

    cost = pl.CostEstimate(
        flops=2 * rows * cols,
        transcendentals=0,
        bytes_accessed=2 * rows * cols * itemsize
        + params.size * jnp.dtype(params.dtype).itemsize,
    )

    out2 = pl.pallas_call(
        kernel,
        out_shape=jax.ShapeDtypeStruct((rows, cols), x.dtype),
        grid=grid,
        in_specs=[p_spec, x_spec],
        out_specs=x_spec,
        compiler_params=pltpu.CompilerParams(
            dimension_semantics=("parallel", "parallel"),
            vmem_limit_bytes=budget,
        ),
        cost_estimate=cost,
        input_output_aliases={1: 0} if donate_x else {},
    )(params, x2)

    return out2.reshape(N, C, H, W)


def _reference(x, running_mean, running_var, weight, bias, eps=EPS):
    """Pure-JAX mirror of the PyTorch forward."""
    m = running_mean[None, :, None, None]
    v = running_var[None, :, None, None]
    w = weight[None, :, None, None]
    b = bias[None, :, None, None]
    return w * ((x - m) / jnp.sqrt(v + eps)) + b


if __name__ == "__main__":
    key = jax.random.PRNGKey(0)
    kx1, kx2, km, kv, kw, kb = jax.random.split(key, 6)

    C = 4
    # Deterministic per-channel parameters (perturbed so channel math is exercised).
    running_mean = 0.1 * jax.random.normal(km, (C,), dtype=jnp.float32)
    running_var = 1.0 + 0.5 * jax.random.uniform(kv, (C,), dtype=jnp.float32)
    weight = 1.0 + 0.1 * jax.random.normal(kw, (C,), dtype=jnp.float32)
    bias = 0.1 * jax.random.normal(kb, (C,), dtype=jnp.float32)

    # Case 1: H*W divisible by 128 -> layout A (rows-are-channels).
    x1 = jax.random.normal(kx1, (2, C, 16, 16), dtype=jnp.float32)
    out1 = jax.block_until_ready(
        affine_batch_norm_2d(x1, running_mean, running_var, weight, bias))
    ref1 = _reference(x1, running_mean, running_var, weight, bias)
    assert out1.shape == x1.shape and out1.dtype == x1.dtype
    assert jnp.allclose(out1, ref1, atol=1e-5, rtol=1e-5), "mismatch (layout A)"

    # Case 2: H*W = 49 (not 128-aligned) -> layout B (lanes-are-channels).
    x2 = jax.random.normal(kx2, (2, C, 7, 7), dtype=jnp.float32)
    out2 = jax.block_until_ready(
        affine_batch_norm_2d(x2, running_mean, running_var, weight, bias))
    ref2 = _reference(x2, running_mean, running_var, weight, bias)
    assert out2.shape == x2.shape and out2.dtype == x2.dtype
    assert jnp.allclose(out2, ref2, atol=1e-5, rtol=1e-5), "mismatch (layout B)"

    print("KERNEL_OK")
</pallas_src>

<mosaic_0001>
module attributes {stable_mosaic.version = 11 : i64} {
  func.func @_bn_kernel_row_params(%arg0: i32, %arg1: i32, %arg2: memref<8x2xf32, #tpu.memory_space<vmem>>, %arg3: memref<8x128xf32, #tpu.memory_space<vmem>>, %arg4: memref<8x128xf32, #tpu.memory_space<vmem>>) attributes {dimension_semantics = [#tpu.dimension_semantics<parallel>, #tpu.dimension_semantics<parallel>], iteration_bounds = array<i64: 1, 2>, scalar_prefetch = 0 : i64, scratch_operands = 0 : i64, tpu.core_type = #tpu.core_type<tc>, window_params = [{transform_indices = @transform_0, window_bounds = array<i64: 8, 2>}, {transform_indices = @transform_1, window_bounds = array<i64: 8, 128>}, {transform_indices = @transform_2, window_bounds = array<i64: 8, 128>}]} {
    %c0 = arith.constant 0 : index
    %c0_0 = arith.constant 0 : index
    %0 = vector.load %arg2[%c0, %c0_0] : memref<8x2xf32, #tpu.memory_space<vmem>>, vector<8x2xf32>
    %c0_1 = arith.constant 0 : index
    %c0_2 = arith.constant 0 : index
    %1 = vector.load %arg3[%c0_1, %c0_2] : memref<8x128xf32, #tpu.memory_space<vmem>>, vector<8x128xf32>
    %2 = vector.extract_strided_slice %0 {offsets = [0, 0], sizes = [8, 1], strides = [1, 1]} : vector<8x2xf32> to vector<8x1xf32>
    %3 = vector.broadcast %2 : vector<8x1xf32> to vector<8x128xf32>
    %4 = arith.mulf %1, %3 : vector<8x128xf32>
    %5 = vector.extract_strided_slice %0 {offsets = [0, 1], sizes = [8, 1], strides = [1, 1]} : vector<8x2xf32> to vector<8x1xf32>
    %6 = vector.broadcast %5 : vector<8x1xf32> to vector<8x128xf32>
    %7 = arith.addf %4, %6 : vector<8x128xf32>
    %c0_3 = arith.constant 0 : index
    %c0_4 = arith.constant 0 : index
    %8 = vector.load %arg4[%c0_3, %c0_4] : memref<8x128xf32, #tpu.memory_space<vmem>>, vector<8x128xf32>
    tpu.vector_store %arg4[%c0_3, %c0_4], %7 {strides = array<i32>} : memref<8x128xf32, #tpu.memory_space<vmem>>, vector<8x128xf32>,
    return
  }
  func.func @transform_0(%arg0: i32, %arg1: i32) -> (i32, i32) {
    %c0_i32 = arith.constant 0 : i32
    %c0_i32_0 = arith.constant 0 : i32
    return %arg0, %c0_i32 : i32, i32
  }
  func.func @transform_1(%arg0: i32, %arg1: i32) -> (i32, i32) {
    %c0_i32 = arith.constant 0 : i32
    return %arg0, %arg1 : i32, i32
  }
  func.func @transform_2(%arg0: i32, %arg1: i32) -> (i32, i32) {
    %c0_i32 = arith.constant 0 : i32
    return %arg0, %arg1 : i32, i32
  }
}

</mosaic_0001>

<llo_original>
// kernel: tpu_custom_call.1
$region0: #{tpu_custom_call.1}
  #allocation0 [shape = 'u32[]', space=smem, size = 0x4, offset = 0x4, fixed_abs, tag = 'smem constant byte address 0x4 - core index']
  #allocation1 [shape = 'u32[144,128]{1,0:T(1,128)}', space=vmem, size = 0x12000, scoped, tag = 'internal scratch']
  %s0 = inlined_call_operand.vmem [shape: f32[8,2], index: 0, kind: input, shape index: {}]
  %s1 = inlined_call_operand.hbm [shape: f32[8,256], index: 1, kind: input, shape index: {}]
  %s2 = inlined_call_operand.hbm [shape: f32[8,256], index: 2, kind: output, shape index: {}]
  %s3 = sld [smem:[#allocation0]]
  $region45: #{tpu_custom_call.1} parent=0
    _
  %s5 = ssub.s32 1, %s3
  %s6 = scalar_select 0, %s5, %s3
  $region1: #{tpu_custom_call.1} parent=0
    #allocation2 [shape = 'u8[8192]{0}', space=vmem, size = 0x2000, scoped, tag = 'input window, operand 1']
    #allocation3 [shape = 's32[2]{0}', space=sflag, size = 0x8, scoped, tag = 'scoped memory for tpu_custom_call.1']
    #allocation4 [shape = 's32[2]{0}', space=sflag, size = 0x8, scoped, tag = 'scoped memory for tpu_custom_call.1']
    #allocation5 [shape = 'u8[8192]{0}', space=vmem, size = 0x2000, scoped, tag = 'output window, operand 0']
    %7 = vsyncpa [#allocation3], 0
    %s8 = scalar_lea.sflag [#allocation3], 1
    %9 = vsyncpa %s8, 0
    %10 = vsyncpa [#allocation4], 0
    %s11 = scalar_lea.sflag [#allocation4], 1
    %12 = vsyncpa %s11, 0
    loop: start=0, step=1, limit=4
    $region2: #{tpu_custom_call.1} parent=1 // loop_pre_header
      _
    $region3: #{tpu_custom_call.1} parent=1 // loop_header
      %s14 = sphi 0, %s18
      %p15 = scmp.ge.s32.totalorder %s14, 4
      %s21 = sphi 0, %s33
      %s22 = sphi 0, %s29
      %s23 = sphi 0, %s21
      %s24 = sphi 0, %s22
      %s25 = sphi 0, %s23
      %s26 = sphi 0, %s24
      %s36 = sphi 0, %s38
      %s39 = sphi 0, %s36
      %s40 = sphi 0, %s39
      %s56 = sphi 0, %s40
      %s64 = sphi 0, %s66
      %s67 = sphi 0, %s64
      %s68 = sphi 0, %s67
      %s84 = sphi 0, %s68
      %s92 = sphi 0, %s94
      %s95 = sphi 0, %s92
      %s96 = sphi 0, %s95
      %s112 = sphi 0, %s96
    $region4: #{tpu_custom_call.1} parent=1 // loop_header_branch
      %17 = sbr.rel (%p15) target = $region8
    $region5: #{tpu_custom_call.1} parent=1 // loop_body
      %s19 = ssub.s32 %s14, 1
      %s20 = ssub.s32 %s14, 2
      %s27 = sadd.s32 1, %s22
      %p28 = scmp.ge.s32.totalorder %s27, 2
      %s29 = scalar_select %p28, 0, %s27
      %s30 = sadd.s32 1, %s21
      %s31 = scalar_select %p28, %s30, %s21
      %p32 = scmp.ge.s32.totalorder %s31, 1
      %s33 = scalar_select %p32, 0, %s31
      %s34 = ssub.s32 %s21, %s33
      %p35 = scmp.eq.s32.totalorder %s34, 0
      %s37 = sadd.s32 %s36, 1
      %s38 = scalar_select %p35, %s36, %s37
      %p41 = pneg %p35
      %p42 = scmp.eq.s32.totalorder %s14, 1
      %p43 = por %p41, %p42
      %p44 = scmp.ne.s32.totalorder %s36, %s39
      %p45 = scmp.eq.s32.totalorder %s14, 0
      %p46 = por %p44, %p45
      %p47 = scmp.ne.s32.totalorder %s36, %s39
      %p48 = scmp.eq.s32.totalorder %s19, 1
      %p49 = por %p47, %p48
      %p50 = scmp.ne.s32.totalorder %s39, %s40
      %p51 = scmp.eq.s32.totalorder %s19, 0
      %p52 = por %p50, %p51
      %p53 = scmp.ne.s32.totalorder %s39, %s40
      %p54 = scmp.eq.s32.totalorder %s20, 1
      %p55 = por %p53, %p54
      %p57 = scmp.ne.s32.totalorder %s40, %s56
      %p58 = scmp.eq.s32.totalorder %s20, 0
      %p59 = por %p57, %p58
      %s60 = ssub.s32 %s21, %s33
      %s61 = ssub.s32 %s22, %s29
      %s62 = sor.u32 %s60, %s61
      %p63 = scmp.eq.s32.totalorder %s62, 0
      %s65 = sadd.s32 %s64, 1
      %s66 = scalar_select %p63, %s64, %s65
      %p69 = pneg %p63
      %p70 = scmp.eq.s32.totalorder %s14, 1
      %p71 = por %p69, %p70
      %p72 = scmp.ne.s32.totalorder %s64, %s67
      %p73 = scmp.eq.s32.totalorder %s14, 0
      %p74 = por %p72, %p73
      %p75 = scmp.ne.s32.totalorder %s64, %s67
      %p76 = scmp.eq.s32.totalorder %s19, 1
      %p77 = por %p75, %p76
      %p78 = scmp.ne.s32.totalorder %s67, %s68
      %p79 = scmp.eq.s32.totalorder %s19, 0
      %p80 = por %p78, %p79
      %p81 = scmp.ne.s32.totalorder %s67, %s68
      %p82 = scmp.eq.s32.totalorder %s20, 1
      %p83 = por %p81, %p82
      %p85 = scmp.ne.s32.totalorder %s68, %s84
      %p86 = scmp.eq.s32.totalorder %s20, 0
      %p87 = por %p85, %p86
      %s88 = ssub.s32 %s21, %s33
      %s89 = ssub.s32 %s22, %s29
      %s90 = sor.u32 %s88, %s89
      %p91 = scmp.eq.s32.totalorder %s90, 0
      %s93 = sadd.s32 %s92, 1
      %s94 = scalar_select %p91, %s92, %s93
      %p97 = pneg %p91
      %p98 = scmp.eq.s32.totalorder %s14, 1
      %p99 = por %p97, %p98
      %p100 = scmp.ne.s32.totalorder %s92, %s95
      %p101 = scmp.eq.s32.totalorder %s14, 0
      %p102 = por %p100, %p101
      %p103 = scmp.ne.s32.totalorder %s92, %s95
      %p104 = scmp.eq.s32.totalorder %s19, 1
      %p105 = por %p103, %p104
      %p106 = scmp.ne.s32.totalorder %s95, %s96
      %p107 = scmp.eq.s32.totalorder %s19, 0
      %p108 = por %p106, %p107
      %p109 = scmp.ne.s32.totalorder %s95, %s96
      %p110 = scmp.eq.s32.totalorder %s20, 1
      %p111 = por %p109, %p110
      %p113 = scmp.ne.s32.totalorder %s96, %s112
      %p114 = scmp.eq.s32.totalorder %s20, 0
      %p115 = por %p113, %p114
      %p116 = scmp.le.s32.totalorder 1, %s14
      %p117 = scmp.lt.s32.totalorder %s14, 3
      %p118 = pnand %p116, %p117
      %p119 = pneg %p118
      // Predicated region
      $region9: #{tpu_custom_call.1} parent=5 // pred_check
        _
      $region10: #{tpu_custom_call.1} parent=5 // pred_check_branch
        %121 = sbr.rel (%p118) target = $region12
      $region11: #{tpu_custom_call.1} parent=5 // pred_region
        %s122 = ssub.s32 %s14, 1
        // Predicated region
        $region13: #{tpu_custom_call.1} parent=11 // pred_check
          %p123 = pneg %p52
        $region14: #{tpu_custom_call.1} parent=11 // pred_check_branch
          %125 = sbr.rel (%p123) target = $region16
        $region15: #{tpu_custom_call.1} parent=11 // pred_region
          %p126 = scmp.lt.s32.totalorder %s23, 0
          %s127 = scalar_select %p126, %s23, 0
          %s128 = smul.addr %s127, 8
          %s129 = scalar_lea.vmem %s0, %s128
        $region16: #{tpu_custom_call.1} parent=11 // pred_fallthru
          _
      $region12: #{tpu_custom_call.1} parent=5 // pred_fallthru
        _
      %p130 = scmp.lt.s32.totalorder %s14, 2
      // Predicated region
      $region17: #{tpu_custom_call.1} parent=5 // pred_check
        %p131 = pneg %p130
      $region18: #{tpu_custom_call.1} parent=5 // pred_check_branch
        %133 = sbr.rel (%p131) target = $region20
      $region19: #{tpu_custom_call.1} parent=5 // pred_region
        // Predicated region
        $region21: #{tpu_custom_call.1} parent=19 // pred_check
          %p134 = pneg %p74
        $region22: #{tpu_custom_call.1} parent=19 // pred_check_branch
          %136 = sbr.rel (%p134) target = $region24
        $region23: #{tpu_custom_call.1} parent=19 // pred_region
          %s137 = sand.u32 %s64, 1
          %s138 = scalar_lea.sflag [#allocation3], %s137
          %s139 = sand.u32 %s64, 1
          %s140 = smul.addr %s139, 8
          %s141 = scalar_lea.vmem [#allocation2], %s140
          %s143 = ssub.s32 128, 128
          %144 = vsyncadd %s138, %s143
          %s145 = smul.addr %s21, 2
          %s146 = sadd.s32 %s22, %s145
          %s147 = smul.addr %s146, 128
          %s148 = scalar_lea.hbm %s1, %s147
          %s150 = sshll.u32 %s141, 4
          %s151 = int_to_ptr.vmem [resolvable:$true] %s150
          %153 = dma.hbm_to_vmem [thread:$0]  %s148, 128, %s151, %s138
        $region24: #{tpu_custom_call.1} parent=19 // pred_fallthru
          _
      $region20: #{tpu_custom_call.1} parent=5 // pred_fallthru
        _
      %p154 = scmp.le.s32.totalorder 1, %s14
      %p155 = scmp.lt.s32.totalorder %s14, 3
      %p156 = pnand %p154, %p155
      %p157 = pneg %p156
      // Predicated region
      $region25: #{tpu_custom_call.1} parent=5 // pred_check
        _
      $region26: #{tpu_custom_call.1} parent=5 // pred_check_branch
        %159 = sbr.rel (%p156) target = $region28
      $region27: #{tpu_custom_call.1} parent=5 // pred_region
        %s160 = ssub.s32 %s14, 1
        %s161 = sand.u32 %s67, 1
        %s162 = scalar_lea.sflag [#allocation3], %s161
        %s163 = sand.u32 %s67, 1
        %s164 = smul.addr %s163, 8
        %s165 = scalar_lea.vmem [#allocation2], %s164
        // Predicated region
        $region29: #{tpu_custom_call.1} parent=27 // pred_check
          %p166 = pneg %p80
        $region30: #{tpu_custom_call.1} parent=27 // pred_check_branch
          %168 = sbr.rel (%p166) target = $region32
        $region31: #{tpu_custom_call.1} parent=27 // pred_region
          %169 = dma.done %s162, 128
        $region32: #{tpu_custom_call.1} parent=27 // pred_fallthru
          _
        %p170 = scmp.lt.s32.totalorder %s23, 0
        %s171 = scalar_select %p170, %s23, 0
        %s172 = smul.addr %s171, 8
        %s173 = scalar_lea.vmem %s0, %s172
        %p174 = pneg %p52
        %p175 = pneg %p49
        %s176 = sand.u32 %s67, 1
        %s177 = scalar_lea.sflag [#allocation3], %s176
        %s178 = sand.u32 %s67, 1
        %s179 = smul.addr %s178, 8
        %s180 = scalar_lea.vmem [#allocation2], %s179
        %p181 = pneg %p80
        %p182 = pneg %p77
        %p183 = pneg %p108
        %p184 = pneg %p105
        %s185 = sand.u32 %s95, 1
        %s186 = scalar_lea.sflag [#allocation4], %s185
        %s187 = sand.u32 %s95, 1
        %s188 = smul.addr %s187, 8
        %s189 = scalar_lea.vmem [#allocation5], %s188
        %p190 = scmp.lt.s32.totalorder %s23, 0
        %s191 = scalar_select %p190, %s23, 0
        %s192 = smul.addr %s191, 8
        %s193 = scalar_lea.vmem %s0, %s192
        %v194 = vld [vmem:[%s193] sm:$0xff]
        %v195 = vld [vmem:[%s165] sm:$0xff]
        %197 = vset.pattern.permute.xlu0 0
        %198 = vperm.xlu0 %197, %v194
        %v199 = vpop.permute.xlu0 %198
        %v201 = vmul.f32 %v195, %v199
        %202 = vset.pattern.permute.xlu0 1
        %203 = vperm.xlu0 %202, %v194
        %v204 = vpop.permute.xlu0 %203
        %v206 = vadd.f32 %v201, %v204
        %207 = vst [vmem:[%s189] sm:$0xff] %v206
        %s208 = sand.u32 %s95, 1
        %s209 = scalar_lea.sflag [#allocation4], %s208
        %s210 = sand.u32 %s95, 1
        %s211 = smul.addr %s210, 8
        %s212 = scalar_lea.vmem [#allocation5], %s211
        // Predicated region
        $region33: #{tpu_custom_call.1} parent=27 // pred_check
          %p213 = pneg %p105
        $region34: #{tpu_custom_call.1} parent=27 // pred_check_branch
          %215 = sbr.rel (%p213) target = $region36
        $region35: #{tpu_custom_call.1} parent=27 // pred_region
          %s217 = ssub.s32 128, 128
          %218 = vsyncadd %s209, %s217
          %s219 = smul.addr %s23, 2
          %s220 = sadd.s32 %s24, %s219
          %s221 = smul.addr %s220, 128
          %s222 = scalar_lea.hbm %s2, %s221
          %s224 = sshll.u32 %s212, 4
          %s225 = int_to_ptr.vmem [resolvable:$true] %s224
          %227 = dma.vmem_to_hbm [thread:$0]  %s225, 128, %s222, %s209
        $region36: #{tpu_custom_call.1} parent=27 // pred_fallthru
          _
      $region28: #{tpu_custom_call.1} parent=5 // pred_fallthru
        _
      %p228 = scmp.le.s32.totalorder 2, %s14
      // Predicated region
      $region37: #{tpu_custom_call.1} parent=5 // pred_check
        %p229 = pneg %p228
      $region38: #{tpu_custom_call.1} parent=5 // pred_check_branch
        %231 = sbr.rel (%p229) target = $region40
      $region39: #{tpu_custom_call.1} parent=5 // pred_region
        %s232 = ssub.s32 %s14, 2
        // Predicated region
        $region41: #{tpu_custom_call.1} parent=39 // pred_check
          %p233 = pneg %p111
        $region42: #{tpu_custom_call.1} parent=39 // pred_check_branch
          %235 = sbr.rel (%p233) target = $region44
        $region43: #{tpu_custom_call.1} parent=39 // pred_region
          %s236 = sand.u32 %s96, 1
          %s237 = scalar_lea.sflag [#allocation4], %s236
          %s238 = sand.u32 %s96, 1
          %s239 = smul.addr %s238, 8
          %s240 = scalar_lea.vmem [#allocation5], %s239
          %241 = dma.done %s237, 128
        $region44: #{tpu_custom_call.1} parent=39 // pred_fallthru
          _
      $region40: #{tpu_custom_call.1} parent=5 // pred_fallthru
        _
    $region6: #{tpu_custom_call.1} parent=1 // loop_footer
      %s18 = sadd.s32 1, %s14
    $region7: #{tpu_custom_call.1} parent=1 // loop_footer_branch
      %13 = sbr.rel target = $region3
    $region8: #{tpu_custom_call.1} parent=1 // loop_exit
      _
    %242 = vsyncpa [#allocation3], 1
    %s243 = scalar_lea.sflag [#allocation3], 1
    %244 = vsyncpa %s243, 1
    %245 = vsyncpa [#allocation4], 1
    %s246 = scalar_lea.sflag [#allocation4], 1
    %247 = vsyncpa %s246, 1

</llo_original>
